<compile_context>
chip_gen: v6e
topology: v6e:2x2x1
jax: 0.10.0
libtpu: 0.0.40
codegen_flags: <defaults>
</compile_context>

<pallas_src>
import functools

import jax
import jax.numpy as jnp
from jax.experimental import pallas as pl
from jax.experimental.pallas import tpu as pltpu


# TODO(synk): Encoder.encode / Decoder.decode are abstract (`pass`) in the
# source module; a standard linear+sigmoid encoder/decoder pair is used here.


def _round_up(n, m):
    return ((n + m - 1) // m) * m


def _forward_body(x, we_ref, be_ref, wd_ref, bd_ref, o_ref):
    """encode + decode on one [TB, X] batch tile held in VMEM."""
    # encode: z = sigmoid(x @ We + be)
    z = jnp.dot(x, we_ref[...], preferred_element_type=jnp.float32) + be_ref[...]
    z = jax.nn.sigmoid(z)
    # decode: x_p = sigmoid(z @ Wd + bd)
    xp = jnp.dot(z, wd_ref[...], preferred_element_type=jnp.float32) + bd_ref[...]
    o_ref[...] = jax.nn.sigmoid(xp).astype(o_ref.dtype)


def _dae_eval_kernel(x_ref, we_ref, be_ref, wd_ref, bd_ref, o_ref):
    _forward_body(x_ref[...], we_ref, be_ref, wd_ref, bd_ref, o_ref)


def _dae_train_kernel(x_ref, n_ref, we_ref, be_ref, wd_ref, bd_ref, o_ref):
    # Noise add fused in-kernel on the VMEM tile (no HBM round-trip of noisy x).
    _forward_body(x_ref[...] + n_ref[...], we_ref, be_ref, wd_ref, bd_ref, o_ref)


def dae_forward(x_nchw, params, *, training=False, noise_key=None,
                noise_level=0.4, tb=None):
    """DenoisingAutoencoder.forward.

    x_nchw : [B, 1, H, W] float32
    params : dict with We [X, Z], be [1, Z], Wd [Z, X], bd [1, X]
    """
    B, C, H, W = x_nchw.shape
    assert C == 1
    x_dim = H * W
    x = x_nchw.reshape(B, x_dim).astype(jnp.float32)

    we, be, wd, bd = params["We"], params["be"], params["Wd"], params["bd"]
    z_dim = we.shape[1]

    # Lane-dense feature dims (exact-zero padding leaves the math unchanged:
    # padded z units see zero weights/bias and multiply zero decode rows).
    xp_dim = _round_up(x_dim, 128)
    zp_dim = _round_up(z_dim, 128)

    if tb is None:
        # Multiple of 8 (f32 sublane); large enough to amortize per-grid-step
        # overhead, small enough that double-buffered x/noise/out tiles plus
        # resident weights fit comfortably in VMEM (incl. v7x's 64 MiB).
        tb = min(256, _round_up(B, 8))
    tb = _round_up(tb, 8)
    bp = _round_up(B, tb)

    noise = None
    if training:
        if noise_key is None:
            noise_key = jax.random.PRNGKey(0)
        noise = (jax.random.normal(noise_key, (B, x_dim), dtype=jnp.float32)
                 * jnp.float32(noise_level))

    if xp_dim != x_dim:
        x = jnp.pad(x, ((0, 0), (0, xp_dim - x_dim)))
        we = jnp.pad(we, ((0, xp_dim - x_dim), (0, 0)))
        wd = jnp.pad(wd, ((0, 0), (0, xp_dim - x_dim)))
        bd = jnp.pad(bd, ((0, 0), (0, xp_dim - x_dim)))
        if noise is not None:
            noise = jnp.pad(noise, ((0, 0), (0, xp_dim - x_dim)))
    if zp_dim != z_dim:
        we = jnp.pad(we, ((0, 0), (0, zp_dim - z_dim)))
        be = jnp.pad(be, ((0, 0), (0, zp_dim - z_dim)))
        wd = jnp.pad(wd, ((0, zp_dim - z_dim), (0, 0)))
    if bp != B:
        x = jnp.pad(x, ((0, bp - B), (0, 0)))
        if noise is not None:
            noise = jnp.pad(noise, ((0, bp - B), (0, 0)))

    grid = (bp // tb,)
    x_spec = pl.BlockSpec((tb, xp_dim), lambda i: (i, 0))          # batch tile
    weight_specs = [
        pl.BlockSpec((xp_dim, zp_dim), lambda i: (0, 0)),          # We (resident)
        pl.BlockSpec((1, zp_dim), lambda i: (0, 0)),               # be (resident)
        pl.BlockSpec((zp_dim, xp_dim), lambda i: (0, 0)),          # Wd (resident)
        pl.BlockSpec((1, xp_dim), lambda i: (0, 0)),               # bd (resident)
    ]
    out_spec = pl.BlockSpec((tb, xp_dim), lambda i: (i, 0))
    out_shape = jax.ShapeDtypeStruct((bp, xp_dim), x.dtype)
    compiler_params = pltpu.CompilerParams(
        dimension_semantics=("parallel",))  # batch tiles are independent

    if training:
        in_specs = [x_spec, x_spec] + weight_specs   # x tile + noise tile
        operands = (x, noise, we, be, wd, bd)
        kernel = _dae_train_kernel
    else:
        in_specs = [x_spec] + weight_specs
        operands = (x, we, be, wd, bd)
        kernel = _dae_eval_kernel

    out = pl.pallas_call(
        kernel,
        out_shape=out_shape,
        grid_spec=pltpu.PrefetchScalarGridSpec(
            num_scalar_prefetch=0,
            grid=grid,
            in_specs=in_specs,
            out_specs=out_spec),
        compiler_params=compiler_params,
    )(*operands)

    out = out[:B, :x_dim]
    return out.reshape(B, 1, H, W)


def init_params(key, x_dim, z_dim, dtype=jnp.float32):
    """Deterministic PyTorch-Linear-style init: U(-1/sqrt(fan_in), 1/sqrt(fan_in))."""
    k1, k2, k3, k4 = jax.random.split(key, 4)
    lim_e = 1.0 / jnp.sqrt(jnp.float32(x_dim))
    lim_d = 1.0 / jnp.sqrt(jnp.float32(z_dim))
    return {
        "We": jax.random.uniform(k1, (x_dim, z_dim), dtype, -lim_e, lim_e),
        "be": jax.random.uniform(k2, (1, z_dim), dtype, -lim_e, lim_e),
        "Wd": jax.random.uniform(k3, (z_dim, x_dim), dtype, -lim_d, lim_d),
        "bd": jax.random.uniform(k4, (1, x_dim), dtype, -lim_d, lim_d),
    }


def dae_reference(x_nchw, params, noise=None):
    """Pure-JAX reference for the forward pass (eval if noise is None)."""
    B, C, H, W = x_nchw.shape
    x = x_nchw.reshape(B, H * W)
    if noise is not None:
        x = x + noise
    z = jax.nn.sigmoid(x @ params["We"] + params["be"])
    xp = jax.nn.sigmoid(z @ params["Wd"] + params["bd"])
    return xp.reshape(B, 1, H, W)


if __name__ == "__main__":
    key = jax.random.PRNGKey(0)
    k_x, k_p, k_n = jax.random.split(key, 3)

    B, H, W = 16, 16, 16
    x_dim = H * W            # 256
    z_dim = 32               # padded to 128 (lane-dense) inside the wrapper

    x = jax.random.normal(k_x, (B, 1, H, W), dtype=jnp.float32)
    params = init_params(k_p, x_dim, z_dim)

    # eval-mode forward (self.training == False): no noise -> must match ref.
    out = dae_forward(x, params, training=False, tb=8)   # grid of 2 batch tiles
    out = jax.block_until_ready(out)
    ref = dae_reference(x, params)
    assert out.shape == (B, 1, H, W)
    assert jnp.allclose(out, ref, atol=1e-5, rtol=1e-5)

    # training-mode forward: same noise draw is reproducible from the key,
    # so the fused kernel must match the pure-JAX noisy reference.
    out_train = dae_forward(x, params, training=True, noise_key=k_n, tb=8)
    out_train = jax.block_until_ready(out_train)
    noise_ref = jax.random.normal(k_n, (B, x_dim), dtype=jnp.float32) * jnp.float32(0.4)
    ref_train = dae_reference(x, params, noise=noise_ref)
    assert out_train.shape == (B, 1, H, W)
    assert bool(jnp.all(jnp.isfinite(out_train)))
    assert jnp.allclose(out_train, ref_train, atol=1e-5, rtol=1e-5)
    assert not jnp.allclose(out_train, out)   # noise actually perturbed the output

    print("KERNEL_OK")
</pallas_src>

<mosaic_0001>
module attributes {stable_mosaic.version = 11 : i64} {
  func.func @_dae_eval_kernel(%arg0: i32, %arg1: memref<8x256xf32, #tpu.memory_space<vmem>>, %arg2: memref<256x128xf32, #tpu.memory_space<vmem>>, %arg3: memref<1x128xf32, #tpu.memory_space<vmem>>, %arg4: memref<128x256xf32, #tpu.memory_space<vmem>>, %arg5: memref<1x256xf32, #tpu.memory_space<vmem>>, %arg6: memref<8x256xf32, #tpu.memory_space<vmem>>) attributes {dimension_semantics = [#tpu.dimension_semantics<parallel>], iteration_bounds = array<i64: 2>, scalar_prefetch = 0 : i64, scratch_operands = 0 : i64, tpu.core_type = #tpu.core_type<tc>, window_params = [{transform_indices = @transform_0, window_bounds = array<i64: 8, 256>}, {pipeline_mode = #tpu.pipeline_mode<synchronous>, transform_indices = @transform_1, window_bounds = array<i64: 256, 128>}, {pipeline_mode = #tpu.pipeline_mode<synchronous>, transform_indices = @transform_2, window_bounds = array<i64: 1, 128>}, {pipeline_mode = #tpu.pipeline_mode<synchronous>, transform_indices = @transform_3, window_bounds = array<i64: 128, 256>}, {pipeline_mode = #tpu.pipeline_mode<synchronous>, transform_indices = @transform_4, window_bounds = array<i64: 1, 256>}, {transform_indices = @transform_5, window_bounds = array<i64: 8, 256>}]} {
    %c0 = arith.constant 0 : index
    %c0_0 = arith.constant 0 : index
    %0 = vector.load %arg1[%c0, %c0_0] : memref<8x256xf32, #tpu.memory_space<vmem>>, vector<8x256xf32>
    %c0_1 = arith.constant 0 : index
    %c0_2 = arith.constant 0 : index
    %1 = vector.load %arg2[%c0_1, %c0_2] : memref<256x128xf32, #tpu.memory_space<vmem>>, vector<256x128xf32>
    %cst = arith.constant dense<0.000000e+00> : vector<8x128xf32>
    %2 = tpu.matmul %0, %1, %cst {dimension_numbers = #tpu.dot_dimension_numbers<[1], [0], [0], [1], [0, 0, 1, 1], [], []>} : vector<8x256xf32>, vector<256x128xf32>, vector<8x128xf32> -> vector<8x128xf32>
    %c0_3 = arith.constant 0 : index
    %c0_4 = arith.constant 0 : index
    %3 = vector.load %arg3[%c0_3, %c0_4] : memref<1x128xf32, #tpu.memory_space<vmem>>, vector<1x128xf32>
    %4 = vector.broadcast %3 : vector<1x128xf32> to vector<8x128xf32>
    %5 = arith.addf %2, %4 : vector<8x128xf32>
    %6 = arith.negf %5 : vector<8x128xf32>
    %7 = math.exp %6 : vector<8x128xf32>
    %cst_5 = arith.constant 1.000000e+00 : f32
    %8 = vector.broadcast %cst_5 : f32 to vector<8x128xf32>
    %9 = arith.addf %8, %7 : vector<8x128xf32>
    %10 = arith.divf %8, %9 : vector<8x128xf32>
    %c0_6 = arith.constant 0 : index
    %c0_7 = arith.constant 0 : index
    %11 = vector.load %arg4[%c0_6, %c0_7] : memref<128x256xf32, #tpu.memory_space<vmem>>, vector<128x256xf32>
    %cst_8 = arith.constant dense<0.000000e+00> : vector<8x256xf32>
    %12 = tpu.matmul %10, %11, %cst_8 {dimension_numbers = #tpu.dot_dimension_numbers<[1], [0], [0], [1], [0, 0, 1, 1], [], []>} : vector<8x128xf32>, vector<128x256xf32>, vector<8x256xf32> -> vector<8x256xf32>
    %c0_9 = arith.constant 0 : index
    %c0_10 = arith.constant 0 : index
    %13 = vector.load %arg5[%c0_9, %c0_10] : memref<1x256xf32, #tpu.memory_space<vmem>>, vector<1x256xf32>
    %14 = vector.broadcast %13 : vector<1x256xf32> to vector<8x256xf32>
    %15 = arith.addf %12, %14 : vector<8x256xf32>
    %16 = arith.negf %15 : vector<8x256xf32>
    %17 = math.exp %16 : vector<8x256xf32>
    %cst_11 = arith.constant 1.000000e+00 : f32
    %18 = vector.broadcast %cst_11 : f32 to vector<8x256xf32>
    %19 = arith.addf %18, %17 : vector<8x256xf32>
    %20 = arith.divf %18, %19 : vector<8x256xf32>
    %c0_12 = arith.constant 0 : index
    %c0_13 = arith.constant 0 : index
    %21 = vector.load %arg6[%c0_12, %c0_13] : memref<8x256xf32, #tpu.memory_space<vmem>>, vector<8x256xf32>
    tpu.vector_store %arg6[%c0_12, %c0_13], %20 {strides = array<i32>} : memref<8x256xf32, #tpu.memory_space<vmem>>, vector<8x256xf32>,
    return
  }
  func.func @transform_0(%arg0: i32) -> (i32, i32) {
    %c0_i32 = arith.constant 0 : i32
    %c0_i32_0 = arith.constant 0 : i32
    return %arg0, %c0_i32 : i32, i32
  }
  func.func @transform_1(%arg0: i32) -> (i32, i32) {
    %c0_i32 = arith.constant 0 : i32
    %c0_i32_0 = arith.constant 0 : i32
    %c0_i32_1 = arith.constant 0 : i32
    return %c0_i32, %c0_i32_0 : i32, i32
  }
  func.func @transform_2(%arg0: i32) -> (i32, i32) {
    %c0_i32 = arith.constant 0 : i32
    %c0_i32_0 = arith.constant 0 : i32
    %c0_i32_1 = arith.constant 0 : i32
    return %c0_i32, %c0_i32_0 : i32, i32
  }
  func.func @transform_3(%arg0: i32) -> (i32, i32) {
    %c0_i32 = arith.constant 0 : i32
    %c0_i32_0 = arith.constant 0 : i32
    %c0_i32_1 = arith.constant 0 : i32
    return %c0_i32, %c0_i32_0 : i32, i32
  }
  func.func @transform_4(%arg0: i32) -> (i32, i32) {
    %c0_i32 = arith.constant 0 : i32
    %c0_i32_0 = arith.constant 0 : i32
    %c0_i32_1 = arith.constant 0 : i32
    return %c0_i32, %c0_i32_0 : i32, i32
  }
  func.func @transform_5(%arg0: i32) -> (i32, i32) {
    %c0_i32 = arith.constant 0 : i32
    %c0_i32_0 = arith.constant 0 : i32
    return %arg0, %c0_i32 : i32, i32
  }
}

</mosaic_0001>

<llo_original>
// kernel: tpu_custom_call.1
$region0: #{tpu_custom_call.1}
  #allocation0 [shape = 'u32[]', space=smem, size = 0x4, offset = 0x4, fixed_abs, tag = 'smem constant byte address 0x4 - core index']
  #allocation1 [shape = 'u32[144,128]{1,0:T(1,128)}', space=vmem, size = 0x12000, scoped, tag = 'internal scratch']
  %s0 = inlined_call_operand.hbm [shape: f32[16,256], index: 0, kind: input, shape index: {}]
  %s1 = inlined_call_operand.hbm [shape: f32[256,128], index: 1, kind: input, shape index: {}]
  %s2 = inlined_call_operand.vmem [shape: f32[1,128], index: 2, kind: input, shape index: {}]
  %s3 = inlined_call_operand.hbm [shape: f32[128,256], index: 3, kind: input, shape index: {}]
  %s4 = inlined_call_operand.vmem [shape: f32[1,256], index: 4, kind: input, shape index: {}]
  %s5 = inlined_call_operand.hbm [shape: f32[16,256], index: 5, kind: output, shape index: {}]
  %s6 = sld [smem:[#allocation0]]
  $region65: #{tpu_custom_call.1} parent=0
    _
  %s8 = ssub.s32 1, %s6
  %s9 = scalar_select 0, %s8, %s6
  $region1: #{tpu_custom_call.1} parent=0
    #allocation2 [shape = 'u8[16384]{0}', space=vmem, size = 0x4000, scoped, tag = 'input window, operand 0']
    #allocation3 [shape = 's32[2]{0}', space=sflag, size = 0x8, scoped, tag = 'scoped memory for tpu_custom_call.1']
    #allocation4 [shape = 's32[2]{0}', space=sflag, size = 0x8, scoped, tag = 'scoped memory for tpu_custom_call.1']
    #allocation5 [shape = 'u8[131072]{0}', space=vmem, size = 0x20000, scoped, tag = 'input window, operand 1, single buffered']
    #allocation6 [shape = 's32[1]{0}', space=sflag, size = 0x4, scoped, tag = 'scoped memory for tpu_custom_call.1']
    #allocation7 [shape = 'u8[131072]{0}', space=vmem, size = 0x20000, scoped, tag = 'input window, operand 3, single buffered']
    #allocation8 [shape = 'u8[16384]{0}', space=vmem, size = 0x4000, scoped, tag = 'output window, operand 0']
    %10 = vsyncpa [#allocation3], 0
    %s11 = scalar_lea.sflag [#allocation3], 1
    %12 = vsyncpa %s11, 0
    %13 = vsyncpa [#allocation6], 0
    %14 = vsyncpa [#allocation4], 0
    %s15 = scalar_lea.sflag [#allocation4], 1
    %16 = vsyncpa %s15, 0
    loop: start=0, step=1, limit=4
    $region2: #{tpu_custom_call.1} parent=1 // loop_pre_header
      _
    $region3: #{tpu_custom_call.1} parent=1 // loop_header
      %s18 = sphi 0, %s22
      %p19 = scmp.ge.s32.totalorder %s18, 4
      %s28 = sphi 0, %s30
      %s31 = sphi 0, %s28
      %s32 = sphi 0, %s31
      %s48 = sphi 0, %s32
      %s52 = sphi 0, %s52
      %s54 = sphi 0, %s52
      %s55 = sphi 0, %s54
      %s69 = sphi 0, %s55
      %s73 = sphi 0, %s73
      %s75 = sphi 0, %s73
      %s76 = sphi 0, %s75
      %s90 = sphi 0, %s76
      %s94 = sphi 0, %s94
      %s96 = sphi 0, %s94
      %s97 = sphi 0, %s96
      %s111 = sphi 0, %s97
      %s115 = sphi 0, %s115
      %s117 = sphi 0, %s115
      %s118 = sphi 0, %s117
      %s132 = sphi 0, %s118
      %s138 = sphi 0, %s140
      %s141 = sphi 0, %s138
      %s142 = sphi 0, %s141
      %s158 = sphi 0, %s142
    $region4: #{tpu_custom_call.1} parent=1 // loop_header_branch
      %21 = sbr.rel (%p19) target = $region8
    $region5: #{tpu_custom_call.1} parent=1 // loop_body
      %s23 = ssub.s32 %s18, 1
      %s24 = ssub.s32 %s18, 2
      %s25 = sadd.s32 %s18, 1
      %s26 = ssub.s32 %s18, %s25
      %p27 = scmp.eq.s32.totalorder %s26, 0
      %s29 = sadd.s32 %s28, 1
      %s30 = scalar_select %p27, %s28, %s29
      %p33 = pneg %p27
      %p34 = scmp.eq.s32.totalorder %s18, 1
      %p35 = por %p33, %p34
      %p36 = scmp.ne.s32.totalorder %s28, %s31
      %p37 = scmp.eq.s32.totalorder %s18, 0
      %p38 = por %p36, %p37
      %p39 = scmp.ne.s32.totalorder %s28, %s31
      %p40 = scmp.eq.s32.totalorder %s23, 1
      %p41 = por %p39, %p40
      %p42 = scmp.ne.s32.totalorder %s31, %s32
      %p43 = scmp.eq.s32.totalorder %s23, 0
      %p44 = por %p42, %p43
      %p45 = scmp.ne.s32.totalorder %s31, %s32
      %p46 = scmp.eq.s32.totalorder %s24, 1
      %p47 = por %p45, %p46
      %p49 = scmp.ne.s32.totalorder %s32, %s48
      %p50 = scmp.eq.s32.totalorder %s24, 0
      %p51 = por %p49, %p50
      %s53 = sadd.s32 %s52, 1
      %p56 = scmp.eq.s32.totalorder %s18, 1
      %p57 = scmp.ne.s32.totalorder %s52, %s54
      %p58 = scmp.eq.s32.totalorder %s18, 0
      %p59 = por %p57, %p58
      %p60 = scmp.ne.s32.totalorder %s52, %s54
      %p61 = scmp.eq.s32.totalorder %s23, 1
      %p62 = por %p60, %p61
      %p63 = scmp.ne.s32.totalorder %s54, %s55
      %p64 = scmp.eq.s32.totalorder %s23, 0
      %p65 = por %p63, %p64
      %p66 = scmp.ne.s32.totalorder %s54, %s55
      %p67 = scmp.eq.s32.totalorder %s24, 1
      %p68 = por %p66, %p67
      %p70 = scmp.ne.s32.totalorder %s55, %s69
      %p71 = scmp.eq.s32.totalorder %s24, 0
      %p72 = por %p70, %p71
      %s74 = sadd.s32 %s73, 1
      %p77 = scmp.eq.s32.totalorder %s18, 1
      %p78 = scmp.ne.s32.totalorder %s73, %s75
      %p79 = scmp.eq.s32.totalorder %s18, 0
      %p80 = por %p78, %p79
      %p81 = scmp.ne.s32.totalorder %s73, %s75
      %p82 = scmp.eq.s32.totalorder %s23, 1
      %p83 = por %p81, %p82
      %p84 = scmp.ne.s32.totalorder %s75, %s76
      %p85 = scmp.eq.s32.totalorder %s23, 0
      %p86 = por %p84, %p85
      %p87 = scmp.ne.s32.totalorder %s75, %s76
      %p88 = scmp.eq.s32.totalorder %s24, 1
      %p89 = por %p87, %p88
      %p91 = scmp.ne.s32.totalorder %s76, %s90
      %p92 = scmp.eq.s32.totalorder %s24, 0
      %p93 = por %p91, %p92
      %s95 = sadd.s32 %s94, 1
      %p98 = scmp.eq.s32.totalorder %s18, 1
      %p99 = scmp.ne.s32.totalorder %s94, %s96
      %p100 = scmp.eq.s32.totalorder %s18, 0
      %p101 = por %p99, %p100
      %p102 = scmp.ne.s32.totalorder %s94, %s96
      %p103 = scmp.eq.s32.totalorder %s23, 1
      %p104 = por %p102, %p103
      %p105 = scmp.ne.s32.totalorder %s96, %s97
      %p106 = scmp.eq.s32.totalorder %s23, 0
      %p107 = por %p105, %p106
      %p108 = scmp.ne.s32.totalorder %s96, %s97
      %p109 = scmp.eq.s32.totalorder %s24, 1
      %p110 = por %p108, %p109
      %p112 = scmp.ne.s32.totalorder %s97, %s111
      %p113 = scmp.eq.s32.totalorder %s24, 0
      %p114 = por %p112, %p113
      %s116 = sadd.s32 %s115, 1
      %p119 = scmp.eq.s32.totalorder %s18, 1
      %p120 = scmp.ne.s32.totalorder %s115, %s117
      %p121 = scmp.eq.s32.totalorder %s18, 0
      %p122 = por %p120, %p121
      %p123 = scmp.ne.s32.totalorder %s115, %s117
      %p124 = scmp.eq.s32.totalorder %s23, 1
      %p125 = por %p123, %p124
      %p126 = scmp.ne.s32.totalorder %s117, %s118
      %p127 = scmp.eq.s32.totalorder %s23, 0
      %p128 = por %p126, %p127
      %p129 = scmp.ne.s32.totalorder %s117, %s118
      %p130 = scmp.eq.s32.totalorder %s24, 1
      %p131 = por %p129, %p130
      %p133 = scmp.ne.s32.totalorder %s118, %s132
      %p134 = scmp.eq.s32.totalorder %s24, 0
      %p135 = por %p133, %p134
      %s136 = ssub.s32 %s18, %s25
      %p137 = scmp.eq.s32.totalorder %s136, 0
      %s139 = sadd.s32 %s138, 1
      %s140 = scalar_select %p137, %s138, %s139
      %p143 = pneg %p137
      %p144 = scmp.eq.s32.totalorder %s18, 1
      %p145 = por %p143, %p144
      %p146 = scmp.ne.s32.totalorder %s138, %s141
      %p147 = scmp.eq.s32.totalorder %s18, 0
      %p148 = por %p146, %p147
      %p149 = scmp.ne.s32.totalorder %s138, %s141
      %p150 = scmp.eq.s32.totalorder %s23, 1
      %p151 = por %p149, %p150
      %p152 = scmp.ne.s32.totalorder %s141, %s142
      %p153 = scmp.eq.s32.totalorder %s23, 0
      %p154 = por %p152, %p153
      %p155 = scmp.ne.s32.totalorder %s141, %s142
      %p156 = scmp.eq.s32.totalorder %s24, 1
      %p157 = por %p155, %p156
      %p159 = scmp.ne.s32.totalorder %s142, %s158
      %p160 = scmp.eq.s32.totalorder %s24, 0
      %p161 = por %p159, %p160
      %p162 = scmp.le.s32.totalorder 1, %s18
      %p163 = scmp.lt.s32.totalorder %s18, 3
      %p164 = pnand %p162, %p163
      %p165 = pneg %p164
      // Predicated region
      $region9: #{tpu_custom_call.1} parent=5 // pred_check
        _
      $region10: #{tpu_custom_call.1} parent=5 // pred_check_branch
        %167 = sbr.rel (%p164) target = $region12
      $region11: #{tpu_custom_call.1} parent=5 // pred_region
        %s168 = ssub.s32 %s18, 1
        // Predicated region
        $region13: #{tpu_custom_call.1} parent=11 // pred_check
          %p169 = pneg %p65
        $region14: #{tpu_custom_call.1} parent=11 // pred_check_branch
          %171 = sbr.rel (%p169) target = $region16
        $region15: #{tpu_custom_call.1} parent=11 // pred_region
          %s173 = ssub.s32 4096, 4096
          %174 = vsyncadd [#allocation6], %s173
          %s175 = sshll.u32 [#allocation5], 4
          %s176 = int_to_ptr.vmem [resolvable:$true] %s175
          %181 = dma.hbm_to_vmem [thread:$0]  %s1, 4096, %s176, [#allocation6], 128, 128, 8
        $region16: #{tpu_custom_call.1} parent=11 // pred_fallthru
          _
        // Predicated region
        $region17: #{tpu_custom_call.1} parent=11 // pred_check
          %p182 = pneg %p86
        $region18: #{tpu_custom_call.1} parent=11 // pred_check_branch
          %184 = sbr.rel (%p182) target = $region20
        $region19: #{tpu_custom_call.1} parent=11 // pred_region
          _
        $region20: #{tpu_custom_call.1} parent=11 // pred_fallthru
          _
        // Predicated region
        $region21: #{tpu_custom_call.1} parent=11 // pred_check
          %p185 = pneg %p107
        $region22: #{tpu_custom_call.1} parent=11 // pred_check_branch
          %187 = sbr.rel (%p185) target = $region24
        $region23: #{tpu_custom_call.1} parent=11 // pred_region
          %s189 = ssub.s32 4096, 4096
          %190 = vsyncadd [#allocation6], %s189
          %s191 = sshll.u32 [#allocation7], 4
          %s192 = int_to_ptr.vmem [resolvable:$true] %s191
          %197 = dma.hbm_to_vmem [thread:$0]  %s3, 4096, %s192, [#allocation6], 256, 256, 16
        $region24: #{tpu_custom_call.1} parent=11 // pred_fallthru
          _
        // Predicated region
        $region25: #{tpu_custom_call.1} parent=11 // pred_check
          %p198 = pneg %p128
        $region26: #{tpu_custom_call.1} parent=11 // pred_check_branch
          %200 = sbr.rel (%p198) target = $region28
        $region27: #{tpu_custom_call.1} parent=11 // pred_region
          _
        $region28: #{tpu_custom_call.1} parent=11 // pred_fallthru
          _
      $region12: #{tpu_custom_call.1} parent=5 // pred_fallthru
        _
      %p201 = scmp.lt.s32.totalorder %s18, 2
      // Predicated region
      $region29: #{tpu_custom_call.1} parent=5 // pred_check
        %p202 = pneg %p201
      $region30: #{tpu_custom_call.1} parent=5 // pred_check_branch
        %204 = sbr.rel (%p202) target = $region32
      $region31: #{tpu_custom_call.1} parent=5 // pred_region
        // Predicated region
        $region33: #{tpu_custom_call.1} parent=31 // pred_check
          %p205 = pneg %p38
        $region34: #{tpu_custom_call.1} parent=31 // pred_check_branch
          %207 = sbr.rel (%p205) target = $region36
        $region35: #{tpu_custom_call.1} parent=31 // pred_region
          %s208 = sand.u32 %s28, 1
          %s209 = scalar_lea.sflag [#allocation3], %s208
          %s210 = sand.u32 %s28, 1
          %s211 = smul.addr %s210, 16
          %s212 = scalar_lea.vmem [#allocation2], %s211
          %s214 = ssub.s32 256, 256
          %215 = vsyncadd %s209, %s214
          %s216 = smul.addr %s18, 2
          %s217 = smul.addr %s216, 128
          %s218 = scalar_lea.hbm %s0, %s217
          %s220 = sshll.u32 %s212, 4
          %s221 = int_to_ptr.vmem [resolvable:$true] %s220
          %223 = dma.hbm_to_vmem [thread:$0]  %s218, 256, %s221, %s209
        $region36: #{tpu_custom_call.1} parent=31 // pred_fallthru
          _
      $region32: #{tpu_custom_call.1} parent=5 // pred_fallthru
        _
      %p224 = scmp.le.s32.totalorder 1, %s18
      %p225 = scmp.lt.s32.totalorder %s18, 3
      %p226 = pnand %p224, %p225
      %p227 = pneg %p226
      // Predicated region
      $region37: #{tpu_custom_call.1} parent=5 // pred_check
        _
      $region38: #{tpu_custom_call.1} parent=5 // pred_check_branch
        %229 = sbr.rel (%p226) target = $region40
      $region39: #{tpu_custom_call.1} parent=5 // pred_region
        %s230 = ssub.s32 %s18, 1
        %s231 = sand.u32 %s31, 1
        %s232 = scalar_lea.sflag [#allocation3], %s231
        %s233 = sand.u32 %s31, 1
        %s234 = smul.addr %s233, 16
        %s235 = scalar_lea.vmem [#allocation2], %s234
        // Predicated region
        $region41: #{tpu_custom_call.1} parent=39 // pred_check
          %p236 = pneg %p44
        $region42: #{tpu_custom_call.1} parent=39 // pred_check_branch
          %238 = sbr.rel (%p236) target = $region44
        $region43: #{tpu_custom_call.1} parent=39 // pred_region
          %239 = dma.done %s232, 256
        $region44: #{tpu_custom_call.1} parent=39 // pred_fallthru
          _
        // Predicated region
        $region45: #{tpu_custom_call.1} parent=39 // pred_check
          %p240 = pneg %p65
        $region46: #{tpu_custom_call.1} parent=39 // pred_check_branch
          %242 = sbr.rel (%p240) target = $region48
        $region47: #{tpu_custom_call.1} parent=39 // pred_region
          %243 = dma.done [#allocation6], 4096
        $region48: #{tpu_custom_call.1} parent=39 // pred_fallthru
          _
        // Predicated region
        $region49: #{tpu_custom_call.1} parent=39 // pred_check
          %p244 = pneg %p107
        $region50: #{tpu_custom_call.1} parent=39 // pred_check_branch
          %246 = sbr.rel (%p244) target = $region52
        $region51: #{tpu_custom_call.1} parent=39 // pred_region
          %247 = dma.done [#allocation6], 4096
        $region52: #{tpu_custom_call.1} parent=39 // pred_fallthru
          _
        %s248 = sand.u32 %s31, 1
        %s249 = scalar_lea.sflag [#allocation3], %s248
        %s250 = sand.u32 %s31, 1
        %s251 = smul.addr %s250, 16
        %s252 = scalar_lea.vmem [#allocation2], %s251
        %p253 = pneg %p44
        %p254 = pneg %p41
        %p255 = pneg %p65
        %p256 = pneg %p62
        %p257 = pneg %p86
        %p258 = pneg %p83
        %p259 = pneg %p107
        %p260 = pneg %p104
        %p261 = pneg %p128
        %p262 = pneg %p125
        %p263 = pneg %p154
        %p264 = pneg %p151
        %s265 = sand.u32 %s141, 1
        %s266 = scalar_lea.sflag [#allocation4], %s265
        %s267 = sand.u32 %s141, 1
        %s268 = smul.addr %s267, 16
        %s269 = scalar_lea.vmem [#allocation8], %s268
        %v270 = vld [vmem:[%s235] sm:$0xff]
        %v271 = vld [vmem:[%s235 + $0x8] sm:$0xff]
        %v272 = vld [vmem:[#allocation5] sm:$0xff]
        %v273 = vld [vmem:[#allocation5 + $0x8] sm:$0xff]
        %v274 = vld [vmem:[#allocation5 + $0x10] sm:$0xff]
        %v275 = vld [vmem:[#allocation5 + $0x18] sm:$0xff]
        %v276 = vld [vmem:[#allocation5 + $0x20] sm:$0xff]
        %v277 = vld [vmem:[#allocation5 + $0x28] sm:$0xff]
        %v278 = vld [vmem:[#allocation5 + $0x30] sm:$0xff]
        %v279 = vld [vmem:[#allocation5 + $0x38] sm:$0xff]
        %v280 = vld [vmem:[#allocation5 + $0x40] sm:$0xff]
        %v281 = vld [vmem:[#allocation5 + $0x48] sm:$0xff]
        %v282 = vld [vmem:[#allocation5 + $0x50] sm:$0xff]
        %v283 = vld [vmem:[#allocation5 + $0x58] sm:$0xff]
        %v284 = vld [vmem:[#allocation5 + $0x60] sm:$0xff]
        %v285 = vld [vmem:[#allocation5 + $0x68] sm:$0xff]
        %v286 = vld [vmem:[#allocation5 + $0x70] sm:$0xff]
        %v287 = vld [vmem:[#allocation5 + $0x78] sm:$0xff]
        %v288 = vld [vmem:[#allocation5 + $0x80] sm:$0xff]
        %v289 = vld [vmem:[#allocation5 + $0x88] sm:$0xff]
        %v290 = vld [vmem:[#allocation5 + $0x90] sm:$0xff]
        %v291 = vld [vmem:[#allocation5 + $0x98] sm:$0xff]
        %v292 = vld [vmem:[#allocation5 + $0xa0] sm:$0xff]
        %v293 = vld [vmem:[#allocation5 + $0xa8] sm:$0xff]
        %v294 = vld [vmem:[#allocation5 + $0xb0] sm:$0xff]
        %v295 = vld [vmem:[#allocation5 + $0xb8] sm:$0xff]
        %v296 = vld [vmem:[#allocation5 + $0xc0] sm:$0xff]
        %v297 = vld [vmem:[#allocation5 + $0xc8] sm:$0xff]
        %v298 = vld [vmem:[#allocation5 + $0xd0] sm:$0xff]
        %v299 = vld [vmem:[#allocation5 + $0xd8] sm:$0xff]
        %v300 = vld [vmem:[#allocation5 + $0xe0] sm:$0xff]
        %v301 = vld [vmem:[#allocation5 + $0xe8] sm:$0xff]
        %v302 = vld [vmem:[#allocation5 + $0xf0] sm:$0xff]
        %v303 = vld [vmem:[#allocation5 + $0xf8] sm:$0xff]
        %v304 = vld [vmem:[%s2] sm:$0x1]
        %v306 = vlaneseq
        %v307 = vshrl.u32 %v306, 7
        %v308 = vsub.s32 0, %v307
        %v309 = vrot.slane %v304, %v308
        %311 = vmatprep.subr.mxu0 0.0
        %312 = vmatpush1.msra.mxu0 %v287
        %313 = vmatprep.subr.mxu0 0.0
        %314 = vmatpush1.msra.mxu0 %v286
        %315 = vmatprep.subr.mxu0 0.0
        %316 = vmatpush1.msra.mxu0 %v285
        %317 = vmatprep.subr.mxu0 0.0
        %318 = vmatpush1.msra.mxu0 %v284
        %319 = vmatprep.subr.mxu0 0.0
        %320 = vmatpush1.msra.mxu0 %v283
        %321 = vmatprep.subr.mxu0 0.0
        %322 = vmatpush1.msra.mxu0 %v282
        %323 = vmatprep.subr.mxu0 0.0
        %324 = vmatpush1.msra.mxu0 %v281
        %325 = vmatprep.subr.mxu0 0.0
        %326 = vmatpush1.msra.mxu0 %v280
        %327 = vmatprep.subr.mxu0 0.0
        %328 = vmatpush1.msra.mxu0 %v279
        %329 = vmatprep.subr.mxu0 0.0
        %330 = vmatpush1.msra.mxu0 %v278
        %331 = vmatprep.subr.mxu0 0.0
        %332 = vmatpush1.msra.mxu0 %v277
        %333 = vmatprep.subr.mxu0 0.0
        %334 = vmatpush1.msra.mxu0 %v276
        %335 = vmatprep.subr.mxu0 0.0
        %336 = vmatpush1.msra.mxu0 %v275
        %337 = vmatprep.subr.mxu0 0.0
        %338 = vmatpush1.msra.mxu0 %v274
        %339 = vmatprep.subr.mxu0 0.0
        %340 = vmatpush1.msra.mxu0 %v273
        %341 = vmatprep.subr.mxu0 0.0
        %342 = vmatpush1.msra.mxu0 %v272
        %343 = vmatprep.subr.mxu0 0.0
        %344 = vmatpush2.msra.mxu0 %v303
        %345 = vmatprep.subr.mxu0 0.0
        %346 = vmatpush2.msra.mxu0 %v302
        %347 = vmatprep.subr.mxu0 0.0
        %348 = vmatpush2.msra.mxu0 %v301
        %349 = vmatprep.subr.mxu0 0.0
        %350 = vmatpush2.msra.mxu0 %v300
        %351 = vmatprep.subr.mxu0 0.0
        %352 = vmatpush2.msra.mxu0 %v299
        %353 = vmatprep.subr.mxu0 0.0
        %354 = vmatpush2.msra.mxu0 %v298
        %355 = vmatprep.subr.mxu0 0.0
        %356 = vmatpush2.msra.mxu0 %v297
        %357 = vmatprep.subr.mxu0 0.0
        %358 = vmatpush2.msra.mxu0 %v296
        %359 = vmatprep.subr.mxu0 0.0
        %360 = vmatpush2.msra.mxu0 %v295
        %361 = vmatprep.subr.mxu0 0.0
        %362 = vmatpush2.msra.mxu0 %v294
        %363 = vmatprep.subr.mxu0 0.0
        %364 = vmatpush2.msra.mxu0 %v293
        %365 = vmatprep.subr.mxu0 0.0
        %366 = vmatpush2.msra.mxu0 %v292
        %367 = vmatprep.subr.mxu0 0.0
        %368 = vmatpush2.msra.mxu0 %v291
        %369 = vmatprep.subr.mxu0 0.0
        %370 = vmatpush2.msra.mxu0 %v290
        %371 = vmatprep.subr.mxu0 0.0
        %372 = vmatpush2.msra.mxu0 %v289
        %373 = vmatprep.subr.mxu0 0.0
        %374 = vmatpush2.msra.mxu0 %v288
        %375 = vmatprep.mubr.f32.mxu0 %v271
        %376 = vmatmul.mubr.f32.gmra.mxu0 %v270
        %v377 = vpop.f32.mrf.mxu0
        %v378 = vadd.f32 %v309, %v377
        %v379 = vpop.f32.mrf.mxu0
        %380 = vdwg.mxu0
        %v381 = vxor.u32 %v378, 2147483648
        %v382 = vmul.f32 %v381, 1.442695
        %v383 = vpow.pop %v382
        %v384 = vadd.f32 %v383, 1.0
        %v385 = vrcp.pop %v384
        %v386 = vmul.f32 1.0, %v385
        %v387 = vld [vmem:[#allocation7] sm:$0xff]
        %v388 = vld [vmem:[#allocation7 + $0x8] sm:$0xff]
        %v389 = vld [vmem:[#allocation7 + $0x10] sm:$0xff]
        %v390 = vld [vmem:[#allocation7 + $0x18] sm:$0xff]
        %v391 = vld [vmem:[#allocation7 + $0x20] sm:$0xff]
        %v392 = vld [vmem:[#allocation7 + $0x28] sm:$0xff]
        %v393 = vld [vmem:[#allocation7 + $0x30] sm:$0xff]
        %v394 = vld [vmem:[#allocation7 + $0x38] sm:$0xff]
        %v395 = vld [vmem:[#allocation7 + $0x40] sm:$0xff]
        %v396 = vld [vmem:[#allocation7 + $0x48] sm:$0xff]
        %v397 = vld [vmem:[#allocation7 + $0x50] sm:$0xff]
        %v398 = vld [vmem:[#allocation7 + $0x58] sm:$0xff]
        %v399 = vld [vmem:[#allocation7 + $0x60] sm:$0xff]
        %v400 = vld [vmem:[#allocation7 + $0x68] sm:$0xff]
        %v401 = vld [vmem:[#allocation7 + $0x70] sm:$0xff]
        %v402 = vld [vmem:[#allocation7 + $0x78] sm:$0xff]
        %v403 = vld [vmem:[#allocation7 + $0x80] sm:$0xff]
        %v404 = vld [vmem:[#allocation7 + $0x88] sm:$0xff]
        %v405 = vld [vmem:[#allocation7 + $0x90] sm:$0xff]
        %v406 = vld [vmem:[#allocation7 + $0x98] sm:$0xff]
        %v407 = vld [vmem:[#allocation7 + $0xa0] sm:$0xff]
        %v408 = vld [vmem:[#allocation7 + $0xa8] sm:$0xff]
        %v409 = vld [vmem:[#allocation7 + $0xb0] sm:$0xff]
        %v410 = vld [vmem:[#allocation7 + $0xb8] sm:$0xff]
        %v411 = vld [vmem:[#allocation7 + $0xc0] sm:$0xff]
        %v412 = vld [vmem:[#allocation7 + $0xc8] sm:$0xff]
        %v413 = vld [vmem:[#allocation7 + $0xd0] sm:$0xff]
        %v414 = vld [vmem:[#allocation7 + $0xd8] sm:$0xff]
        %v415 = vld [vmem:[#allocation7 + $0xe0] sm:$0xff]
        %v416 = vld [vmem:[#allocation7 + $0xe8] sm:$0xff]
        %v417 = vld [vmem:[#allocation7 + $0xf0] sm:$0xff]
        %v418 = vld [vmem:[#allocation7 + $0xf8] sm:$0xff]
        %v419 = vld [vmem:[%s4] sm:$0x3]
        %v421 = vlaneseq
        %v422 = vshrl.u32 %v421, 7
        %v423 = vsub.s32 0, %v422
        %v424 = vrot.slane %v419, %v423
        %v425 = vlaneseq
        %v426 = vshrl.u32 %v425, 7
        %v427 = vsub.s32 1, %v426
        %v428 = vrot.slane %v419, %v427
        %431 = vmatprep.subr.mxu0 %v418
        %432 = vmatpush1.msra.mxu0 %v417
        %433 = vmatprep.subr.mxu0 %v416
        %434 = vmatpush1.msra.mxu0 %v415
        %435 = vmatprep.subr.mxu0 %v414
        %436 = vmatpush1.msra.mxu0 %v413
        %437 = vmatprep.subr.mxu0 %v412
        %438 = vmatpush1.msra.mxu0 %v411
        %439 = vmatprep.subr.mxu0 %v410
        %440 = vmatpush1.msra.mxu0 %v409
        %441 = vmatprep.subr.mxu0 %v408
        %442 = vmatpush1.msra.mxu0 %v407
        %443 = vmatprep.subr.mxu0 %v406
        %444 = vmatpush1.msra.mxu0 %v405
        %445 = vmatprep.subr.mxu0 %v404
        %446 = vmatpush1.msra.mxu0 %v403
        %447 = vmatprep.subr.mxu0 %v402
        %448 = vmatpush1.msra.mxu0 %v401
        %449 = vmatprep.subr.mxu0 %v400
        %450 = vmatpush1.msra.mxu0 %v399
        %451 = vmatprep.subr.mxu0 %v398
        %452 = vmatpush1.msra.mxu0 %v397
        %453 = vmatprep.subr.mxu0 %v396
        %454 = vmatpush1.msra.mxu0 %v395
        %455 = vmatprep.subr.mxu0 %v394
        %456 = vmatpush1.msra.mxu0 %v393
        %457 = vmatprep.subr.mxu0 %v392
        %458 = vmatpush1.msra.mxu0 %v391
        %459 = vmatprep.subr.mxu0 %v390
        %460 = vmatpush1.msra.mxu0 %v389
        %461 = vmatprep.subr.mxu0 %v388
        %462 = vmatpush1.msra.mxu0 %v387
        %463 = vmatprep.subr.mxu0 0.0
        %464 = vmatpush2.msra.mxu0 0.0
        %465 = vmatprep.subr.mxu0 0.0
        %466 = vmatpush2.msra.mxu0 0.0
        %467 = vmatprep.subr.mxu0 0.0
        %468 = vmatpush2.msra.mxu0 0.0
        %469 = vmatprep.subr.mxu0 0.0
        %470 = vmatpush2.msra.mxu0 0.0
        %471 = vmatprep.subr.mxu0 0.0
        %472 = vmatpush2.msra.mxu0 0.0
        %473 = vmatprep.subr.mxu0 0.0
        %474 = vmatpush2.msra.mxu0 0.0
        %475 = vmatprep.subr.mxu0 0.0
        %476 = vmatpush2.msra.mxu0 0.0
        %477 = vmatprep.subr.mxu0 0.0
        %478 = vmatpush2.msra.mxu0 0.0
        %479 = vmatprep.subr.mxu0 0.0
        %480 = vmatpush2.msra.mxu0 0.0
        %481 = vmatprep.subr.mxu0 0.0
        %482 = vmatpush2.msra.mxu0 0.0
        %483 = vmatprep.subr.mxu0 0.0
        %484 = vmatpush2.msra.mxu0 0.0
        %485 = vmatprep.subr.mxu0 0.0
        %486 = vmatpush2.msra.mxu0 0.0
        %487 = vmatprep.subr.mxu0 0.0
        %488 = vmatpush2.msra.mxu0 0.0
        %489 = vmatprep.subr.mxu0 0.0
        %490 = vmatpush2.msra.mxu0 0.0
        %491 = vmatprep.subr.mxu0 0.0
        %492 = vmatpush2.msra.mxu0 0.0
        %493 = vmatprep.subr.mxu0 0.0
        %494 = vmatpush2.msra.mxu0 0.0
        %495 = vmatprep.mubr.f32.mxu0 0.0
        %496 = vmatmul.mubr.f32.gmra.mxu0 %v386
        %v497 = vpop.f32.mrf.mxu0
        %v498 = vadd.f32 %v424, %v497
        %v499 = vpop.f32.mrf.mxu0
        %v500 = vadd.f32 %v428, %v499
        %501 = vdwg.mxu0
        %v502 = vxor.u32 %v498, 2147483648
        %v503 = vxor.u32 %v500, 2147483648
        %v504 = vmul.f32 %v502, 1.442695
        %v505 = vpow.pop %v504
        %v506 = vmul.f32 %v503, 1.442695
        %v507 = vpow.pop %v506
        %v508 = vadd.f32 %v505, 1.0
        %v509 = vadd.f32 %v507, 1.0
        %v510 = vrcp.pop %v508
        %v511 = vmul.f32 1.0, %v510
        %v512 = vrcp.pop %v509
        %v513 = vmul.f32 1.0, %v512
        %514 = vst [vmem:[%s269] sm:$0xff] %v511
        %515 = vst [vmem:[%s269 + $0x8] sm:$0xff] %v513
        %s516 = sand.u32 %s141, 1
        %s517 = scalar_lea.sflag [#allocation4], %s516
        %s518 = sand.u32 %s141, 1
        %s519 = smul.addr %s518, 16
        %s520 = scalar_lea.vmem [#allocation8], %s519
        // Predicated region
        $region53: #{tpu_custom_call.1} parent=39 // pred_check
          %p521 = pneg %p151
        $region54: #{tpu_custom_call.1} parent=39 // pred_check_branch
          %523 = sbr.rel (%p521) target = $region56
        $region55: #{tpu_custom_call.1} parent=39 // pred_region
          %s525 = ssub.s32 256, 256
          %526 = vsyncadd %s517, %s525
          %s527 = smul.addr %s23, 2
          %s528 = smul.addr %s527, 128
          %s529 = scalar_lea.hbm %s5, %s528
          %s531 = sshll.u32 %s520, 4
          %s532 = int_to_ptr.vmem [resolvable:$true] %s531
          %534 = dma.vmem_to_hbm [thread:$0]  %s532, 256, %s529, %s517
        $region56: #{tpu_custom_call.1} parent=39 // pred_fallthru
          _
      $region40: #{tpu_custom_call.1} parent=5 // pred_fallthru
        _
      %p535 = scmp.le.s32.totalorder 2, %s18
      // Predicated region
      $region57: #{tpu_custom_call.1} parent=5 // pred_check
        %p536 = pneg %p535
      $region58: #{tpu_custom_call.1} parent=5 // pred_check_branch
        %538 = sbr.rel (%p536) target = $region60
      $region59: #{tpu_custom_call.1} parent=5 // pred_region
        %s539 = ssub.s32 %s18, 2
        // Predicated region
        $region61: #{tpu_custom_call.1} parent=59 // pred_check
          %p540 = pneg %p157
        $region62: #{tpu_custom_call.1} parent=59 // pred_check_branch
          %542 = sbr.rel (%p540) target = $region64
        $region63: #{tpu_custom_call.1} parent=59 // pred_region
          %s543 = sand.u32 %s142, 1
          %s544 = scalar_lea.sflag [#allocation4], %s543
          %s545 = sand.u32 %s142, 1
          %s546 = smul.addr %s545, 16
          %s547 = scalar_lea.vmem [#allocation8], %s546
          %548 = dma.done %s544, 256
        $region64: #{tpu_custom_call.1} parent=59 // pred_fallthru
          _
      $region60: #{tpu_custom_call.1} parent=5 // pred_fallthru
        _
    $region6: #{tpu_custom_call.1} parent=1 // loop_footer
      %s22 = sadd.s32 1, %s18
    $region7: #{tpu_custom_call.1} parent=1 // loop_footer_branch
      %17 = sbr.rel target = $region3
    $region8: #{tpu_custom_call.1} parent=1 // loop_exit
      _
    %549 = vsyncpa [#allocation3], 1
    %s550 = scalar_lea.sflag [#allocation3], 1
    %551 = vsyncpa %s550, 1
    %552 = vsyncpa [#allocation6], 1
    %553 = vsyncpa [#allocation4], 1
    %s554 = scalar_lea.sflag [#allocation4], 1
    %555 = vsyncpa %s554, 1

</llo_original>
